<compile_context>
chip_gen: v7x
topology: tpu7x:2x2x1
jax: 0.10.0
libtpu: 0.0.40
codegen_flags: <defaults>
</compile_context>

<pallas_src>
import functools

import jax
import jax.numpy as jnp
from jax.experimental import pallas as pl
from jax.experimental.pallas import tpu as pltpu

IN_DIM = 28 * 28   # 784 (logical fc0 input width)
IN_PAD = 896       # 7 * 128 — lane-aligned K for fc0
HID = 256
OUT = 10           # logical fc2 output width
OUT_PAD = 128      # lane-dense output block


def _round_up(n, m):
    return (n + m - 1) // m * m


def ddnet_kernel(x_ref, w0_ref, wd_ref, w2_ref, o_ref):
    # x_ref : (TB, 896)   bf16  activations (zero-padded batch rows / K cols)
    # w0_ref: (896, 256)  bf16  fc0 weight, (in, out) layout, zero-padded rows
    # wd_ref: (256, 256)  bf16  dd  weight, (in, out) layout
    # w2_ref: (256, 128)  bf16  fc2 weight, (in, out) layout, zero-padded cols
    # o_ref : (TB, 128)   f32
    h = jnp.dot(x_ref[...], w0_ref[...], preferred_element_type=jnp.float32)
    c = h                                       # gate stays f32 (v5e VPU: no bf16)

    wd = wd_ref[...]
    for _ in range(2):                          # static unroll, tiny fixed trip count
        h = jnp.dot(h.astype(jnp.bfloat16), wd,
                    preferred_element_type=jnp.float32) * c

    o_ref[...] = jnp.dot(h.astype(jnp.bfloat16), w2_ref[...],
                         preferred_element_type=jnp.float32).astype(o_ref.dtype)


def prepare_ddnet_params(w_fc0, w_dd, w_fc2):
    """One-time parameter prep (call once, outside the hot path).

    Takes PyTorch-convention (out, in) f32 weights; returns (in, out) bf16
    weights zero-padded to lane-aligned shapes.
    """
    w0_t = jnp.zeros((IN_PAD, HID), jnp.float32).at[:IN_DIM, :].set(jnp.asarray(w_fc0).T)
    wd_t = jnp.asarray(w_dd).T
    w2_t = jnp.zeros((HID, OUT_PAD), jnp.float32).at[:, :OUT].set(jnp.asarray(w_fc2).T)
    return (w0_t.astype(jnp.bfloat16),
            wd_t.astype(jnp.bfloat16),
            w2_t.astype(jnp.bfloat16))


@functools.partial(jax.jit, static_argnames=("tb",))
def ddnet_forward(x, params, tb=256):
    """x: (B, 784) f32. params: output of prepare_ddnet_params. Returns (B, 10) f32."""
    w0_t, wd_t, w2_t = params
    B = x.shape[0]

    # Batch tile: multiple of 8 sublanes; cap at `tb` (256 feeds the MXU at full
    # height on v6e/v7x; still fine on v5e's 128-wide MXU).
    TB = min(tb, _round_up(B, 8))
    Bp = _round_up(B, TB)

    # Zero-pad batch rows and K columns; cast the streamed activation to bf16.
    xp = jnp.zeros((Bp, IN_PAD), jnp.bfloat16).at[:B, :IN_DIM].set(
        x.astype(jnp.bfloat16))

    flops = 2 * Bp * (IN_PAD * HID + 2 * HID * HID + HID * OUT_PAD) + 2 * Bp * HID
    bytes_accessed = (xp.size * 2 + w0_t.size * 2 + wd_t.size * 2
                      + w2_t.size * 2 + Bp * OUT_PAD * 4)

    out = pl.pallas_call(
        ddnet_kernel,
        out_shape=jax.ShapeDtypeStruct((Bp, OUT_PAD), jnp.float32),
        grid_spec=pl.GridSpec(
            grid=(Bp // TB,),
            in_specs=[
                pl.BlockSpec((TB, IN_PAD), lambda i: (i, 0)),     # streamed per tile
                pl.BlockSpec((IN_PAD, HID), lambda i: (0, 0)),    # resident weights
                pl.BlockSpec((HID, HID), lambda i: (0, 0)),
                pl.BlockSpec((HID, OUT_PAD), lambda i: (0, 0)),
            ],
            out_specs=pl.BlockSpec((TB, OUT_PAD), lambda i: (i, 0)),
        ),
        compiler_params=pltpu.CompilerParams(
            dimension_semantics=("parallel",),   # batch tiles shard across v7x cores
        ),
        cost_estimate=pl.CostEstimate(
            flops=flops, transcendentals=0, bytes_accessed=bytes_accessed),
    )(xp, w0_t, wd_t, w2_t)

    return out[:B, :OUT]


def reference_forward(x, w_fc0, w_dd, w_fc2):
    """Pure-JAX f32 reference mirroring the PyTorch math."""
    h = x @ w_fc0.T
    c = h
    for _ in range(2):
        h = (h @ w_dd.T) * c
    return h @ w_fc2.T


if __name__ == "__main__":
    key = jax.random.PRNGKey(0)
    kx, k0, kd, k2 = jax.random.split(key, 4)

    B = 8  # small batch; rows map onto sublanes (multiple of 8)
    x = jax.random.normal(kx, (B, IN_DIM), dtype=jnp.float32)

    # Deterministic synthetic weights, PyTorch nn.Linear (out, in) shapes,
    # scaled ~ 1/sqrt(fan_in) like the default init.
    w_fc0 = jax.random.uniform(k0, (HID, IN_DIM), jnp.float32, -1.0, 1.0) / jnp.sqrt(IN_DIM)
    w_dd = jax.random.uniform(kd, (HID, HID), jnp.float32, -1.0, 1.0) / jnp.sqrt(HID)
    w_fc2 = jax.random.uniform(k2, (OUT, HID), jnp.float32, -1.0, 1.0) / jnp.sqrt(HID)

    # One-time weight prep (transpose + pad + bf16) hoisted out of the forward path.
    params = prepare_ddnet_params(w_fc0, w_dd, w_fc2)

    out = jax.block_until_ready(ddnet_forward(x, params))

    ref = reference_forward(x, w_fc0, w_dd, w_fc2)
    assert out.shape == (B, OUT)
    # bf16 weight/activation storage -> loosened tolerance vs f32 reference.
    assert jnp.allclose(out, ref, atol=2e-2, rtol=2e-2), (
        f"mismatch vs reference, max abs err = {jnp.max(jnp.abs(out - ref))}")

    print("KERNEL_OK")
</pallas_src>

<mosaic_0001>
module attributes {stable_mosaic.version = 11 : i64} {
  func.func @ddnet_kernel(%arg0: i32, %arg1: memref<8x896xbf16, #tpu.memory_space<vmem>>, %arg2: memref<896x256xbf16, #tpu.memory_space<vmem>>, %arg3: memref<256x256xbf16, #tpu.memory_space<vmem>>, %arg4: memref<256x128xbf16, #tpu.memory_space<vmem>>, %arg5: memref<8x128xf32, #tpu.memory_space<vmem>>) attributes {dimension_semantics = [#tpu.dimension_semantics<parallel>], iteration_bounds = array<i64: 1>, scalar_prefetch = 0 : i64, scratch_operands = 0 : i64, tpu.core_type = #tpu.core_type<tc>, window_params = [{transform_indices = @transform_0, window_bounds = array<i64: 8, 896>}, {pipeline_mode = #tpu.pipeline_mode<synchronous>, transform_indices = @transform_1, window_bounds = array<i64: 896, 256>}, {pipeline_mode = #tpu.pipeline_mode<synchronous>, transform_indices = @transform_2, window_bounds = array<i64: 256, 256>}, {pipeline_mode = #tpu.pipeline_mode<synchronous>, transform_indices = @transform_3, window_bounds = array<i64: 256, 128>}, {transform_indices = @transform_4, window_bounds = array<i64: 8, 128>}]} {
    %c0 = arith.constant 0 : index
    %c0_0 = arith.constant 0 : index
    %0 = vector.load %arg1[%c0, %c0_0] : memref<8x896xbf16, #tpu.memory_space<vmem>>, vector<8x896xbf16>
    %c0_1 = arith.constant 0 : index
    %c0_2 = arith.constant 0 : index
    %1 = vector.load %arg2[%c0_1, %c0_2] : memref<896x256xbf16, #tpu.memory_space<vmem>>, vector<896x256xbf16>
    %cst = arith.constant dense<0.000000e+00> : vector<8x256xf32>
    %2 = tpu.matmul %0, %1, %cst {dimension_numbers = #tpu.dot_dimension_numbers<[1], [0], [0], [1], [0, 0, 1, 1], [], []>} : vector<8x896xbf16>, vector<896x256xbf16>, vector<8x256xf32> -> vector<8x256xf32>
    %c0_3 = arith.constant 0 : index
    %c0_4 = arith.constant 0 : index
    %3 = vector.load %arg3[%c0_3, %c0_4] : memref<256x256xbf16, #tpu.memory_space<vmem>>, vector<256x256xbf16>
    %4 = arith.truncf %2 : vector<8x256xf32> to vector<8x256xbf16>
    %cst_5 = arith.constant dense<0.000000e+00> : vector<8x256xf32>
    %5 = tpu.matmul %4, %3, %cst_5 {dimension_numbers = #tpu.dot_dimension_numbers<[1], [0], [0], [1], [0, 0, 1, 1], [], []>} : vector<8x256xbf16>, vector<256x256xbf16>, vector<8x256xf32> -> vector<8x256xf32>
    %6 = arith.mulf %5, %2 : vector<8x256xf32>
    %7 = arith.truncf %6 : vector<8x256xf32> to vector<8x256xbf16>
    %cst_6 = arith.constant dense<0.000000e+00> : vector<8x256xf32>
    %8 = tpu.matmul %7, %3, %cst_6 {dimension_numbers = #tpu.dot_dimension_numbers<[1], [0], [0], [1], [0, 0, 1, 1], [], []>} : vector<8x256xbf16>, vector<256x256xbf16>, vector<8x256xf32> -> vector<8x256xf32>
    %9 = arith.mulf %8, %2 : vector<8x256xf32>
    %10 = arith.truncf %9 : vector<8x256xf32> to vector<8x256xbf16>
    %c0_7 = arith.constant 0 : index
    %c0_8 = arith.constant 0 : index
    %11 = vector.load %arg4[%c0_7, %c0_8] : memref<256x128xbf16, #tpu.memory_space<vmem>>, vector<256x128xbf16>
    %cst_9 = arith.constant dense<0.000000e+00> : vector<8x128xf32>
    %12 = tpu.matmul %10, %11, %cst_9 {dimension_numbers = #tpu.dot_dimension_numbers<[1], [0], [0], [1], [0, 0, 1, 1], [], []>} : vector<8x256xbf16>, vector<256x128xbf16>, vector<8x128xf32> -> vector<8x128xf32>
    %c0_10 = arith.constant 0 : index
    %c0_11 = arith.constant 0 : index
    %13 = vector.load %arg5[%c0_10, %c0_11] : memref<8x128xf32, #tpu.memory_space<vmem>>, vector<8x128xf32>
    tpu.vector_store %arg5[%c0_10, %c0_11], %12 {strides = array<i32>} : memref<8x128xf32, #tpu.memory_space<vmem>>, vector<8x128xf32>,
    return
  }
  func.func @transform_0(%arg0: i32) -> (i32, i32) {
    %c0_i32 = arith.constant 0 : i32
    %c0_i32_0 = arith.constant 0 : i32
    return %arg0, %c0_i32 : i32, i32
  }
  func.func @transform_1(%arg0: i32) -> (i32, i32) {
    %c0_i32 = arith.constant 0 : i32
    %c0_i32_0 = arith.constant 0 : i32
    %c0_i32_1 = arith.constant 0 : i32
    return %c0_i32, %c0_i32_0 : i32, i32
  }
  func.func @transform_2(%arg0: i32) -> (i32, i32) {
    %c0_i32 = arith.constant 0 : i32
    %c0_i32_0 = arith.constant 0 : i32
    %c0_i32_1 = arith.constant 0 : i32
    return %c0_i32, %c0_i32_0 : i32, i32
  }
  func.func @transform_3(%arg0: i32) -> (i32, i32) {
    %c0_i32 = arith.constant 0 : i32
    %c0_i32_0 = arith.constant 0 : i32
    %c0_i32_1 = arith.constant 0 : i32
    return %c0_i32, %c0_i32_0 : i32, i32
  }
  func.func @transform_4(%arg0: i32) -> (i32, i32) {
    %c0_i32 = arith.constant 0 : i32
    %c0_i32_0 = arith.constant 0 : i32
    return %arg0, %c0_i32 : i32, i32
  }
}

</mosaic_0001>

<llo_original>
// kernel: ddnet_forward.1
$region0: #{ddnet_forward.1}
  #allocation0 [shape = 'u32[]', space=smem, size = 0x4, offset = 0x4, fixed_abs, tag = 'smem constant byte address 0x4 - core index']
  #allocation1 [shape = 'u32[144,128]{1,0:T(1,128)}', space=vmem, size = 0x12000, scoped, tag = 'internal scratch']
  %s0 = inlined_call_operand.vmem [shape: bf16[8,896], index: 0, kind: input, shape index: {}]
  %s1 = inlined_call_operand.hbm [shape: bf16[896,256], index: 1, kind: input, shape index: {}]
  %s2 = inlined_call_operand.hbm [shape: bf16[256,256], index: 2, kind: input, shape index: {}]
  %s3 = inlined_call_operand.vmem [shape: bf16[256,128], index: 3, kind: input, shape index: {}]
  %s4 = inlined_call_operand.hbm [shape: f32[8,128], index: 4, kind: output, shape index: {}]
  %s5 = sld [smem:[#allocation0]]
  $region34: #{ddnet_forward.1} parent=0
    _
  %s7 = ssub.s32 1, %s5
  %s8 = scalar_select 0, %s7, %s5
  $region1: #{ddnet_forward.1} parent=0
    #allocation2 [shape = 'u8[458752]{0}', space=vmem, size = 0x70000, scoped, tag = 'input window, operand 1, single buffered']
    #allocation3 [shape = 's32[1]{0}', space=sflag, size = 0x4, scoped, tag = 'scoped memory for ddnet_forward.1']
    #allocation4 [shape = 's32[1]{0}', space=sflag, size = 0x4, scoped, tag = 'scoped memory for ddnet_forward.1']
    #allocation5 [shape = 'u8[131072]{0}', space=vmem, size = 0x20000, scoped, tag = 'input window, operand 2, single buffered']
    #allocation6 [shape = 's32[1]{0}', space=sflag, size = 0x4, scoped, tag = 'scoped memory for ddnet_forward.1']
    #allocation7 [shape = 'u8[4096]{0}', space=vmem, size = 0x1000, scoped, tag = 'output window, operand 0, single buffered']
    %9 = vsyncpa [#allocation3], 0
    %10 = vsyncpa [#allocation6], 0
    %11 = vsyncpa [#allocation4], 0
    // Predicated region
    $region2: #{ddnet_forward.1} parent=1 // pred_check
      _
    $region3: #{ddnet_forward.1} parent=1 // pred_check_branch
      %13 = sbr.rel (0) target = $region5
    $region4: #{ddnet_forward.1} parent=1 // pred_region
      _
    $region5: #{ddnet_forward.1} parent=1 // pred_fallthru
      _
    // Predicated region
    $region6: #{ddnet_forward.1} parent=1 // pred_check
      _
    $region7: #{ddnet_forward.1} parent=1 // pred_check_branch
      %15 = sbr.rel (0) target = $region9
    $region8: #{ddnet_forward.1} parent=1 // pred_region
      %s17 = ssub.s32 14336, 14336
      %18 = vsyncadd [#allocation3], %s17
      %s19 = sshll.u32 [#allocation2], 4
      %s20 = int_to_ptr.vmem [resolvable:$true] %s19
      %25 = dma.hbm_to_vmem [thread:$0]  %s1, 14336, %s20, [#allocation3], 128, 128, 8
    $region9: #{ddnet_forward.1} parent=1 // pred_fallthru
      _
    // Predicated region
    $region10: #{ddnet_forward.1} parent=1 // pred_check
      _
    $region11: #{ddnet_forward.1} parent=1 // pred_check_branch
      %27 = sbr.rel (0) target = $region13
    $region12: #{ddnet_forward.1} parent=1 // pred_region
      %s29 = ssub.s32 4096, 4096
      %30 = vsyncadd [#allocation6], %s29
      %s31 = sshll.u32 [#allocation5], 4
      %s32 = int_to_ptr.vmem [resolvable:$true] %s31
      %37 = dma.hbm_to_vmem [thread:$0]  %s2, 4096, %s32, [#allocation6], 128, 128, 8
    $region13: #{ddnet_forward.1} parent=1 // pred_fallthru
      _
    // Predicated region
    $region14: #{ddnet_forward.1} parent=1 // pred_check
      _
    $region15: #{ddnet_forward.1} parent=1 // pred_check_branch
      %39 = sbr.rel (0) target = $region17
    $region16: #{ddnet_forward.1} parent=1 // pred_region
      _
    $region17: #{ddnet_forward.1} parent=1 // pred_fallthru
      _
    // Predicated region
    $region18: #{ddnet_forward.1} parent=1 // pred_check
      _
    $region19: #{ddnet_forward.1} parent=1 // pred_check_branch
      %41 = sbr.rel (0) target = $region21
    $region20: #{ddnet_forward.1} parent=1 // pred_region
      %42 = dma.done [#allocation3], 14336
    $region21: #{ddnet_forward.1} parent=1 // pred_fallthru
      _
    // Predicated region
    $region22: #{ddnet_forward.1} parent=1 // pred_check
      _
    $region23: #{ddnet_forward.1} parent=1 // pred_check_branch
      %44 = sbr.rel (0) target = $region25
    $region24: #{ddnet_forward.1} parent=1 // pred_region
      %45 = dma.done [#allocation6], 4096
    $region25: #{ddnet_forward.1} parent=1 // pred_fallthru
      _
    %v47 = vld [vmem:[%s0] sm:$0xff]
    %v48 = vld [vmem:[%s0 + $0x8] sm:$0xff]
    %v49 = vld [vmem:[%s0 + $0x10] sm:$0xff]
    %v50 = vld [vmem:[%s0 + $0x18] sm:$0xf]
    %v51 = vld [vmem:[#allocation2] sm:$0xff]
    %v52 = vld [vmem:[#allocation2 + $0x8] sm:$0xff]
    %v53 = vld [vmem:[#allocation2 + $0x10] sm:$0xff]
    %v54 = vld [vmem:[#allocation2 + $0x18] sm:$0xff]
    %v55 = vld [vmem:[#allocation2 + $0x20] sm:$0xff]
    %v56 = vld [vmem:[#allocation2 + $0x28] sm:$0xff]
    %v57 = vld [vmem:[#allocation2 + $0x30] sm:$0xff]
    %v58 = vld [vmem:[#allocation2 + $0x38] sm:$0xff]
    %v59 = vld [vmem:[#allocation2 + $0x40] sm:$0xff]
    %v60 = vld [vmem:[#allocation2 + $0x48] sm:$0xff]
    %v61 = vld [vmem:[#allocation2 + $0x50] sm:$0xff]
    %v62 = vld [vmem:[#allocation2 + $0x58] sm:$0xff]
    %v63 = vld [vmem:[#allocation2 + $0x60] sm:$0xff]
    %v64 = vld [vmem:[#allocation2 + $0x68] sm:$0xff]
    %v65 = vld [vmem:[#allocation2 + $0x70] sm:$0xff]
    %v66 = vld [vmem:[#allocation2 + $0x78] sm:$0xff]
    %v67 = vld [vmem:[#allocation2 + $0x80] sm:$0xff]
    %v68 = vld [vmem:[#allocation2 + $0x88] sm:$0xff]
    %v69 = vld [vmem:[#allocation2 + $0x90] sm:$0xff]
    %v70 = vld [vmem:[#allocation2 + $0x98] sm:$0xff]
    %v71 = vld [vmem:[#allocation2 + $0xa0] sm:$0xff]
    %v72 = vld [vmem:[#allocation2 + $0xa8] sm:$0xff]
    %v73 = vld [vmem:[#allocation2 + $0xb0] sm:$0xff]
    %v74 = vld [vmem:[#allocation2 + $0xb8] sm:$0xff]
    %v75 = vld [vmem:[#allocation2 + $0xc0] sm:$0xff]
    %v76 = vld [vmem:[#allocation2 + $0xc8] sm:$0xff]
    %v77 = vld [vmem:[#allocation2 + $0xd0] sm:$0xff]
    %v78 = vld [vmem:[#allocation2 + $0xd8] sm:$0xff]
    %v79 = vld [vmem:[#allocation2 + $0xe0] sm:$0xff]
    %v80 = vld [vmem:[#allocation2 + $0xe8] sm:$0xff]
    %v81 = vld [vmem:[#allocation2 + $0xf0] sm:$0xff]
    %v82 = vld [vmem:[#allocation2 + $0xf8] sm:$0xff]
    %v83 = vld [vmem:[#allocation2 + $0x100] sm:$0xff]
    %v84 = vld [vmem:[#allocation2 + $0x108] sm:$0xff]
    %v85 = vld [vmem:[#allocation2 + $0x110] sm:$0xff]
    %v86 = vld [vmem:[#allocation2 + $0x118] sm:$0xff]
    %v87 = vld [vmem:[#allocation2 + $0x120] sm:$0xff]
    %v88 = vld [vmem:[#allocation2 + $0x128] sm:$0xff]
    %v89 = vld [vmem:[#allocation2 + $0x130] sm:$0xff]
    %v90 = vld [vmem:[#allocation2 + $0x138] sm:$0xff]
    %v91 = vld [vmem:[#allocation2 + $0x140] sm:$0xff]
    %v92 = vld [vmem:[#allocation2 + $0x148] sm:$0xff]
    %v93 = vld [vmem:[#allocation2 + $0x150] sm:$0xff]
    %v94 = vld [vmem:[#allocation2 + $0x158] sm:$0xff]
    %v95 = vld [vmem:[#allocation2 + $0x160] sm:$0xff]
    %v96 = vld [vmem:[#allocation2 + $0x168] sm:$0xff]
    %v97 = vld [vmem:[#allocation2 + $0x170] sm:$0xff]
    %v98 = vld [vmem:[#allocation2 + $0x178] sm:$0xff]
    %v99 = vld [vmem:[#allocation2 + $0x180] sm:$0xff]
    %v100 = vld [vmem:[#allocation2 + $0x188] sm:$0xff]
    %v101 = vld [vmem:[#allocation2 + $0x190] sm:$0xff]
    %v102 = vld [vmem:[#allocation2 + $0x198] sm:$0xff]
    %v103 = vld [vmem:[#allocation2 + $0x1a0] sm:$0xff]
    %v104 = vld [vmem:[#allocation2 + $0x1a8] sm:$0xff]
    %v105 = vld [vmem:[#allocation2 + $0x1b0] sm:$0xff]
    %v106 = vld [vmem:[#allocation2 + $0x1b8] sm:$0xff]
    %v107 = vld [vmem:[#allocation2 + $0x1c0] sm:$0xff]
    %v108 = vld [vmem:[#allocation2 + $0x1c8] sm:$0xff]
    %v109 = vld [vmem:[#allocation2 + $0x1d0] sm:$0xff]
    %v110 = vld [vmem:[#allocation2 + $0x1d8] sm:$0xff]
    %v111 = vld [vmem:[#allocation2 + $0x1e0] sm:$0xff]
    %v112 = vld [vmem:[#allocation2 + $0x1e8] sm:$0xff]
    %v113 = vld [vmem:[#allocation2 + $0x1f0] sm:$0xff]
    %v114 = vld [vmem:[#allocation2 + $0x1f8] sm:$0xff]
    %v115 = vld [vmem:[#allocation2 + $0x200] sm:$0xff]
    %v116 = vld [vmem:[#allocation2 + $0x208] sm:$0xff]
    %v117 = vld [vmem:[#allocation2 + $0x210] sm:$0xff]
    %v118 = vld [vmem:[#allocation2 + $0x218] sm:$0xff]
    %v119 = vld [vmem:[#allocation2 + $0x220] sm:$0xff]
    %v120 = vld [vmem:[#allocation2 + $0x228] sm:$0xff]
    %v121 = vld [vmem:[#allocation2 + $0x230] sm:$0xff]
    %v122 = vld [vmem:[#allocation2 + $0x238] sm:$0xff]
    %v123 = vld [vmem:[#allocation2 + $0x240] sm:$0xff]
    %v124 = vld [vmem:[#allocation2 + $0x248] sm:$0xff]
    %v125 = vld [vmem:[#allocation2 + $0x250] sm:$0xff]
    %v126 = vld [vmem:[#allocation2 + $0x258] sm:$0xff]
    %v127 = vld [vmem:[#allocation2 + $0x260] sm:$0xff]
    %v128 = vld [vmem:[#allocation2 + $0x268] sm:$0xff]
    %v129 = vld [vmem:[#allocation2 + $0x270] sm:$0xff]
    %v130 = vld [vmem:[#allocation2 + $0x278] sm:$0xff]
    %v131 = vld [vmem:[#allocation2 + $0x280] sm:$0xff]
    %v132 = vld [vmem:[#allocation2 + $0x288] sm:$0xff]
    %v133 = vld [vmem:[#allocation2 + $0x290] sm:$0xff]
    %v134 = vld [vmem:[#allocation2 + $0x298] sm:$0xff]
    %v135 = vld [vmem:[#allocation2 + $0x2a0] sm:$0xff]
    %v136 = vld [vmem:[#allocation2 + $0x2a8] sm:$0xff]
    %v137 = vld [vmem:[#allocation2 + $0x2b0] sm:$0xff]
    %v138 = vld [vmem:[#allocation2 + $0x2b8] sm:$0xff]
    %v139 = vld [vmem:[#allocation2 + $0x2c0] sm:$0xff]
    %v140 = vld [vmem:[#allocation2 + $0x2c8] sm:$0xff]
    %v141 = vld [vmem:[#allocation2 + $0x2d0] sm:$0xff]
    %v142 = vld [vmem:[#allocation2 + $0x2d8] sm:$0xff]
    %v143 = vld [vmem:[#allocation2 + $0x2e0] sm:$0xff]
    %v144 = vld [vmem:[#allocation2 + $0x2e8] sm:$0xff]
    %v145 = vld [vmem:[#allocation2 + $0x2f0] sm:$0xff]
    %v146 = vld [vmem:[#allocation2 + $0x2f8] sm:$0xff]
    %v147 = vld [vmem:[#allocation2 + $0x300] sm:$0xff]
    %v148 = vld [vmem:[#allocation2 + $0x308] sm:$0xff]
    %v149 = vld [vmem:[#allocation2 + $0x310] sm:$0xff]
    %v150 = vld [vmem:[#allocation2 + $0x318] sm:$0xff]
    %v151 = vld [vmem:[#allocation2 + $0x320] sm:$0xff]
    %v152 = vld [vmem:[#allocation2 + $0x328] sm:$0xff]
    %v153 = vld [vmem:[#allocation2 + $0x330] sm:$0xff]
    %v154 = vld [vmem:[#allocation2 + $0x338] sm:$0xff]
    %v155 = vld [vmem:[#allocation2 + $0x340] sm:$0xff]
    %v156 = vld [vmem:[#allocation2 + $0x348] sm:$0xff]
    %v157 = vld [vmem:[#allocation2 + $0x350] sm:$0xff]
    %v158 = vld [vmem:[#allocation2 + $0x358] sm:$0xff]
    %v159 = vld [vmem:[#allocation2 + $0x360] sm:$0xff]
    %v160 = vld [vmem:[#allocation2 + $0x368] sm:$0xff]
    %v161 = vld [vmem:[#allocation2 + $0x370] sm:$0xff]
    %v162 = vld [vmem:[#allocation2 + $0x378] sm:$0xff]
    %v167 = vunpack.c.l.b16 %v47
    %v168 = vunpack.c.h.b16 %v47
    %v169 = vunpack.c.l.b16 %v48
    %v170 = vunpack.c.h.b16 %v48
    %v171 = vunpack.c.l.b16 %v49
    %v172 = vunpack.c.h.b16 %v49
    %v173 = vunpack.c.l.b16 %v50
    %v174 = vpack.c.b16 %v167, %v167
    %v175 = vpack.c.b16 %v168, %v168
    %v176 = vpack.c.b16 %v169, %v169
    %v177 = vpack.c.b16 %v170, %v170
    %v178 = vpack.c.b16 %v171, %v171
    %v179 = vpack.c.b16 %v172, %v172
    %v180 = vpack.c.b16 %v173, %v173
    %v300 = vunpack.c.l.b16 %v51
    %v301 = vunpack.c.h.b16 %v51
    %v302 = vunpack.c.l.b16 %v52
    %v303 = vunpack.c.h.b16 %v52
    %v304 = vunpack.c.l.b16 %v53
    %v305 = vunpack.c.h.b16 %v53
    %v306 = vunpack.c.l.b16 %v54
    %v307 = vunpack.c.h.b16 %v54
    %v308 = vunpack.c.l.b16 %v55
    %v309 = vunpack.c.h.b16 %v55
    %v310 = vunpack.c.l.b16 %v56
    %v311 = vunpack.c.h.b16 %v56
    %v312 = vunpack.c.l.b16 %v57
    %v313 = vunpack.c.h.b16 %v57
    %v314 = vunpack.c.l.b16 %v58
    %v315 = vunpack.c.h.b16 %v58
    %v316 = vunpack.c.l.b16 %v59
    %v317 = vunpack.c.h.b16 %v59
    %v318 = vunpack.c.l.b16 %v60
    %v319 = vunpack.c.h.b16 %v60
    %v320 = vunpack.c.l.b16 %v61
    %v321 = vunpack.c.h.b16 %v61
    %v322 = vunpack.c.l.b16 %v62
    %v323 = vunpack.c.h.b16 %v62
    %v324 = vunpack.c.l.b16 %v63
    %v325 = vunpack.c.h.b16 %v63
    %v326 = vunpack.c.l.b16 %v64
    %v327 = vunpack.c.h.b16 %v64
    %v328 = vunpack.c.l.b16 %v65
    %v329 = vunpack.c.h.b16 %v65
    %v330 = vunpack.c.l.b16 %v66
    %v331 = vunpack.c.h.b16 %v66
    %v332 = vunpack.c.l.b16 %v67
    %v333 = vunpack.c.h.b16 %v67
    %v334 = vunpack.c.l.b16 %v68
    %v335 = vunpack.c.h.b16 %v68
    %v336 = vunpack.c.l.b16 %v69
    %v337 = vunpack.c.h.b16 %v69
    %v338 = vunpack.c.l.b16 %v70
    %v339 = vunpack.c.h.b16 %v70
    %v340 = vunpack.c.l.b16 %v71
    %v341 = vunpack.c.h.b16 %v71
    %v342 = vunpack.c.l.b16 %v72
    %v343 = vunpack.c.h.b16 %v72
    %v344 = vunpack.c.l.b16 %v73
    %v345 = vunpack.c.h.b16 %v73
    %v346 = vunpack.c.l.b16 %v74
    %v347 = vunpack.c.h.b16 %v74
    %v348 = vunpack.c.l.b16 %v75
    %v349 = vunpack.c.h.b16 %v75
    %v350 = vunpack.c.l.b16 %v76
    %v351 = vunpack.c.h.b16 %v76
    %v352 = vunpack.c.l.b16 %v77
    %v353 = vunpack.c.h.b16 %v77
    %v354 = vunpack.c.l.b16 %v78
    %v355 = vunpack.c.h.b16 %v78
    %v356 = vunpack.c.l.b16 %v79
    %v357 = vunpack.c.h.b16 %v79
    %v358 = vunpack.c.l.b16 %v80
    %v359 = vunpack.c.h.b16 %v80
    %v360 = vunpack.c.l.b16 %v81
    %v361 = vunpack.c.h.b16 %v81
    %v362 = vunpack.c.l.b16 %v82
    %v363 = vunpack.c.h.b16 %v82
    %v364 = vunpack.c.l.b16 %v83
    %v365 = vunpack.c.h.b16 %v83
    %v366 = vunpack.c.l.b16 %v84
    %v367 = vunpack.c.h.b16 %v84
    %v368 = vunpack.c.l.b16 %v85
    %v369 = vunpack.c.h.b16 %v85
    %v370 = vunpack.c.l.b16 %v86
    %v371 = vunpack.c.h.b16 %v86
    %v372 = vunpack.c.l.b16 %v87
    %v373 = vunpack.c.h.b16 %v87
    %v374 = vunpack.c.l.b16 %v88
    %v375 = vunpack.c.h.b16 %v88
    %v376 = vunpack.c.l.b16 %v89
    %v377 = vunpack.c.h.b16 %v89
    %v378 = vunpack.c.l.b16 %v90
    %v379 = vunpack.c.h.b16 %v90
    %v380 = vunpack.c.l.b16 %v91
    %v381 = vunpack.c.h.b16 %v91
    %v382 = vunpack.c.l.b16 %v92
    %v383 = vunpack.c.h.b16 %v92
    %v384 = vunpack.c.l.b16 %v93
    %v385 = vunpack.c.h.b16 %v93
    %v386 = vunpack.c.l.b16 %v94
    %v387 = vunpack.c.h.b16 %v94
    %v388 = vunpack.c.l.b16 %v95
    %v389 = vunpack.c.h.b16 %v95
    %v390 = vunpack.c.l.b16 %v96
    %v391 = vunpack.c.h.b16 %v96
    %v392 = vunpack.c.l.b16 %v97
    %v393 = vunpack.c.h.b16 %v97
    %v394 = vunpack.c.l.b16 %v98
    %v395 = vunpack.c.h.b16 %v98
    %v396 = vunpack.c.l.b16 %v99
    %v397 = vunpack.c.h.b16 %v99
    %v398 = vunpack.c.l.b16 %v100
    %v399 = vunpack.c.h.b16 %v100
    %v400 = vunpack.c.l.b16 %v101
    %v401 = vunpack.c.h.b16 %v101
    %v402 = vunpack.c.l.b16 %v102
    %v403 = vunpack.c.h.b16 %v102
    %v404 = vunpack.c.l.b16 %v103
    %v405 = vunpack.c.h.b16 %v103
    %v406 = vunpack.c.l.b16 %v104
    %v407 = vunpack.c.h.b16 %v104
    %v408 = vunpack.c.l.b16 %v105
    %v409 = vunpack.c.h.b16 %v105
    %v410 = vunpack.c.l.b16 %v106
    %v411 = vunpack.c.h.b16 %v106
    %v412 = vunpack.c.l.b16 %v107
    %v413 = vunpack.c.h.b16 %v107
    %v414 = vunpack.c.l.b16 %v108
    %v415 = vunpack.c.h.b16 %v108
    %v416 = vunpack.c.l.b16 %v109
    %v417 = vunpack.c.h.b16 %v109
    %v418 = vunpack.c.l.b16 %v110
    %v419 = vunpack.c.h.b16 %v110
    %v420 = vunpack.c.l.b16 %v111
    %v421 = vunpack.c.h.b16 %v111
    %v422 = vunpack.c.l.b16 %v112
    %v423 = vunpack.c.h.b16 %v112
    %v424 = vunpack.c.l.b16 %v113
    %v425 = vunpack.c.h.b16 %v113
    %v426 = vunpack.c.l.b16 %v114
    %v427 = vunpack.c.h.b16 %v114
    %v428 = vunpack.c.l.b16 %v115
    %v429 = vunpack.c.h.b16 %v115
    %v430 = vunpack.c.l.b16 %v116
    %v431 = vunpack.c.h.b16 %v116
    %v432 = vunpack.c.l.b16 %v117
    %v433 = vunpack.c.h.b16 %v117
    %v434 = vunpack.c.l.b16 %v118
    %v435 = vunpack.c.h.b16 %v118
    %v436 = vunpack.c.l.b16 %v119
    %v437 = vunpack.c.h.b16 %v119
    %v438 = vunpack.c.l.b16 %v120
    %v439 = vunpack.c.h.b16 %v120
    %v440 = vunpack.c.l.b16 %v121
    %v441 = vunpack.c.h.b16 %v121
    %v442 = vunpack.c.l.b16 %v122
    %v443 = vunpack.c.h.b16 %v122
    %v444 = vunpack.c.l.b16 %v123
    %v445 = vunpack.c.h.b16 %v123
    %v446 = vunpack.c.l.b16 %v124
    %v447 = vunpack.c.h.b16 %v124
    %v448 = vunpack.c.l.b16 %v125
    %v449 = vunpack.c.h.b16 %v125
    %v450 = vunpack.c.l.b16 %v126
    %v451 = vunpack.c.h.b16 %v126
    %v452 = vunpack.c.l.b16 %v127
    %v453 = vunpack.c.h.b16 %v127
    %v454 = vunpack.c.l.b16 %v128
    %v455 = vunpack.c.h.b16 %v128
    %v456 = vunpack.c.l.b16 %v129
    %v457 = vunpack.c.h.b16 %v129
    %v458 = vunpack.c.l.b16 %v130
    %v459 = vunpack.c.h.b16 %v130
    %v460 = vunpack.c.l.b16 %v131
    %v461 = vunpack.c.h.b16 %v131
    %v462 = vunpack.c.l.b16 %v132
    %v463 = vunpack.c.h.b16 %v132
    %v464 = vunpack.c.l.b16 %v133
    %v465 = vunpack.c.h.b16 %v133
    %v466 = vunpack.c.l.b16 %v134
    %v467 = vunpack.c.h.b16 %v134
    %v468 = vunpack.c.l.b16 %v135
    %v469 = vunpack.c.h.b16 %v135
    %v470 = vunpack.c.l.b16 %v136
    %v471 = vunpack.c.h.b16 %v136
    %v472 = vunpack.c.l.b16 %v137
    %v473 = vunpack.c.h.b16 %v137
    %v474 = vunpack.c.l.b16 %v138
    %v475 = vunpack.c.h.b16 %v138
    %v476 = vunpack.c.l.b16 %v139
    %v477 = vunpack.c.h.b16 %v139
    %v478 = vunpack.c.l.b16 %v140
    %v479 = vunpack.c.h.b16 %v140
    %v480 = vunpack.c.l.b16 %v141
    %v481 = vunpack.c.h.b16 %v141
    %v482 = vunpack.c.l.b16 %v142
    %v483 = vunpack.c.h.b16 %v142
    %v484 = vunpack.c.l.b16 %v143
    %v485 = vunpack.c.h.b16 %v143
    %v486 = vunpack.c.l.b16 %v144
    %v487 = vunpack.c.h.b16 %v144
    %v488 = vunpack.c.l.b16 %v145
    %v489 = vunpack.c.h.b16 %v145
    %v490 = vunpack.c.l.b16 %v146
    %v491 = vunpack.c.h.b16 %v146
    %v492 = vunpack.c.l.b16 %v147
    %v493 = vunpack.c.h.b16 %v147
    %v494 = vunpack.c.l.b16 %v148
    %v495 = vunpack.c.h.b16 %v148
    %v496 = vunpack.c.l.b16 %v149
    %v497 = vunpack.c.h.b16 %v149
    %v498 = vunpack.c.l.b16 %v150
    %v499 = vunpack.c.h.b16 %v150
    %v500 = vunpack.c.l.b16 %v151
    %v501 = vunpack.c.h.b16 %v151
    %v502 = vunpack.c.l.b16 %v152
    %v503 = vunpack.c.h.b16 %v152
    %v504 = vunpack.c.l.b16 %v153
    %v505 = vunpack.c.h.b16 %v153
    %v506 = vunpack.c.l.b16 %v154
    %v507 = vunpack.c.h.b16 %v154
    %v508 = vunpack.c.l.b16 %v155
    %v509 = vunpack.c.h.b16 %v155
    %v510 = vunpack.c.l.b16 %v156
    %v511 = vunpack.c.h.b16 %v156
    %v512 = vunpack.c.l.b16 %v157
    %v513 = vunpack.c.h.b16 %v157
    %v514 = vunpack.c.l.b16 %v158
    %v515 = vunpack.c.h.b16 %v158
    %v516 = vunpack.c.l.b16 %v159
    %v517 = vunpack.c.h.b16 %v159
    %v518 = vunpack.c.l.b16 %v160
    %v519 = vunpack.c.h.b16 %v160
    %v520 = vunpack.c.l.b16 %v161
    %v521 = vunpack.c.h.b16 %v161
    %v522 = vunpack.c.l.b16 %v162
    %v523 = vunpack.c.h.b16 %v162
    %v524 = vpack.c.b16 %v302, %v300
    %v525 = vpack.c.b16 %v303, %v301
    %v526 = vpack.c.b16 %v306, %v304
    %v527 = vpack.c.b16 %v307, %v305
    %v528 = vpack.c.b16 %v310, %v308
    %v529 = vpack.c.b16 %v311, %v309
    %v530 = vpack.c.b16 %v314, %v312
    %v531 = vpack.c.b16 %v315, %v313
    %v532 = vpack.c.b16 %v318, %v316
    %v533 = vpack.c.b16 %v319, %v317
    %v534 = vpack.c.b16 %v322, %v320
    %v535 = vpack.c.b16 %v323, %v321
    %v536 = vpack.c.b16 %v326, %v324
    %v537 = vpack.c.b16 %v327, %v325
    %v538 = vpack.c.b16 %v330, %v328
    %v539 = vpack.c.b16 %v331, %v329
    %v540 = vpack.c.b16 %v334, %v332
    %v541 = vpack.c.b16 %v335, %v333
    %v542 = vpack.c.b16 %v338, %v336
    %v543 = vpack.c.b16 %v339, %v337
    %v544 = vpack.c.b16 %v342, %v340
    %v545 = vpack.c.b16 %v343, %v341
    %v546 = vpack.c.b16 %v346, %v344
    %v547 = vpack.c.b16 %v347, %v345
    %v548 = vpack.c.b16 %v350, %v348
    %v549 = vpack.c.b16 %v351, %v349
    %v550 = vpack.c.b16 %v354, %v352
    %v551 = vpack.c.b16 %v355, %v353
    %v552 = vpack.c.b16 %v358, %v356
    %v553 = vpack.c.b16 %v359, %v357
    %v554 = vpack.c.b16 %v362, %v360
    %v555 = vpack.c.b16 %v363, %v361
    %v556 = vpack.c.b16 %v366, %v364
    %v557 = vpack.c.b16 %v367, %v365
    %v558 = vpack.c.b16 %v370, %v368
    %v559 = vpack.c.b16 %v371, %v369
    %v560 = vpack.c.b16 %v374, %v372
    %v561 = vpack.c.b16 %v375, %v373
    %v562 = vpack.c.b16 %v378, %v376
    %v563 = vpack.c.b16 %v379, %v377
    %v564 = vpack.c.b16 %v382, %v380
    %v565 = vpack.c.b16 %v383, %v381
    %v566 = vpack.c.b16 %v386, %v384
    %v567 = vpack.c.b16 %v387, %v385
    %v568 = vpack.c.b16 %v390, %v388
    %v569 = vpack.c.b16 %v391, %v389
    %v570 = vpack.c.b16 %v394, %v392
    %v571 = vpack.c.b16 %v395, %v393
    %v572 = vpack.c.b16 %v398, %v396
    %v573 = vpack.c.b16 %v399, %v397
    %v574 = vpack.c.b16 %v402, %v400
    %v575 = vpack.c.b16 %v403, %v401
    %v576 = vpack.c.b16 %v406, %v404
    %v577 = vpack.c.b16 %v407, %v405
    %v578 = vpack.c.b16 %v410, %v408
    %v579 = vpack.c.b16 %v411, %v409
    %v580 = vpack.c.b16 %v414, %v412
    %v581 = vpack.c.b16 %v415, %v413
    %v582 = vpack.c.b16 %v418, %v416
    %v583 = vpack.c.b16 %v419, %v417
    %v584 = vpack.c.b16 %v422, %v420
    %v585 = vpack.c.b16 %v423, %v421
    %v586 = vpack.c.b16 %v426, %v424
    %v587 = vpack.c.b16 %v427, %v425
    %v588 = vpack.c.b16 %v430, %v428
    %v589 = vpack.c.b16 %v431, %v429
    %v590 = vpack.c.b16 %v434, %v432
    %v591 = vpack.c.b16 %v435, %v433
    %v592 = vpack.c.b16 %v438, %v436
    %v593 = vpack.c.b16 %v439, %v437
    %v594 = vpack.c.b16 %v442, %v440
    %v595 = vpack.c.b16 %v443, %v441
    %v596 = vpack.c.b16 %v446, %v444
    %v597 = vpack.c.b16 %v447, %v445
    %v598 = vpack.c.b16 %v450, %v448
    %v599 = vpack.c.b16 %v451, %v449
    %v600 = vpack.c.b16 %v454, %v452
    %v601 = vpack.c.b16 %v455, %v453
    %v602 = vpack.c.b16 %v458, %v456
    %v603 = vpack.c.b16 %v459, %v457
    %v604 = vpack.c.b16 %v462, %v460
    %v605 = vpack.c.b16 %v463, %v461
    %v606 = vpack.c.b16 %v466, %v464
    %v607 = vpack.c.b16 %v467, %v465
    %v608 = vpack.c.b16 %v470, %v468
    %v609 = vpack.c.b16 %v471, %v469
    %v610 = vpack.c.b16 %v474, %v472
    %v611 = vpack.c.b16 %v475, %v473
    %v612 = vpack.c.b16 %v478, %v476
    %v613 = vpack.c.b16 %v479, %v477
    %v614 = vpack.c.b16 %v482, %v480
    %v615 = vpack.c.b16 %v483, %v481
    %v616 = vpack.c.b16 %v486, %v484
    %v617 = vpack.c.b16 %v487, %v485
    %v618 = vpack.c.b16 %v490, %v488
    %v619 = vpack.c.b16 %v491, %v489
    %v620 = vpack.c.b16 %v494, %v492
    %v621 = vpack.c.b16 %v495, %v493
    %v622 = vpack.c.b16 %v498, %v496
    %v623 = vpack.c.b16 %v499, %v497
    %v624 = vpack.c.b16 %v502, %v500
    %v625 = vpack.c.b16 %v503, %v501
    %v626 = vpack.c.b16 %v506, %v504
    %v627 = vpack.c.b16 %v507, %v505
    %v628 = vpack.c.b16 %v510, %v508
    %v629 = vpack.c.b16 %v511, %v509
    %v630 = vpack.c.b16 %v514, %v512
    %v631 = vpack.c.b16 %v515, %v513
    %v632 = vpack.c.b16 %v518, %v516
    %v633 = vpack.c.b16 %v519, %v517
    %v634 = vpack.c.b16 %v522, %v520
    %v635 = vpack.c.b16 %v523, %v521
    %748 = vmatprep.subr.bf16.mxu0 %v525
    %749 = vmatpush1.bf16.msra.mxu0 %v524
    %750 = vmatprep.subr.bf16.mxu0 %v527
    %751 = vmatpush1.bf16.msra.mxu0 %v526
    %752 = vmatprep.subr.bf16.mxu0 %v529
    %753 = vmatpush1.bf16.msra.mxu0 %v528
    %754 = vmatprep.subr.bf16.mxu0 %v531
    %755 = vmatpush1.bf16.msra.mxu0 %v530
    %756 = vmatprep.subr.bf16.mxu0 %v533
    %757 = vmatpush1.bf16.msra.mxu0 %v532
    %758 = vmatprep.subr.bf16.mxu0 %v535
    %759 = vmatpush1.bf16.msra.mxu0 %v534
    %760 = vmatprep.subr.bf16.mxu0 %v537
    %761 = vmatpush1.bf16.msra.mxu0 %v536
    %762 = vmatprep.subr.bf16.mxu0 %v539
    %763 = vmatpush1.bf16.msra.mxu0 %v538
    %764 = vmatprep.subr.bf16.mxu0 %v541
    %765 = vmatpush1.bf16.msra.mxu0 %v540
    %766 = vmatprep.subr.bf16.mxu0 %v543
    %767 = vmatpush1.bf16.msra.mxu0 %v542
    %768 = vmatprep.subr.bf16.mxu0 %v545
    %769 = vmatpush1.bf16.msra.mxu0 %v544
    %770 = vmatprep.subr.bf16.mxu0 %v547
    %771 = vmatpush1.bf16.msra.mxu0 %v546
    %772 = vmatprep.subr.bf16.mxu0 %v549
    %773 = vmatpush1.bf16.msra.mxu0 %v548
    %774 = vmatprep.subr.bf16.mxu0 %v551
    %775 = vmatpush1.bf16.msra.mxu0 %v550
    %776 = vmatprep.subr.bf16.mxu0 %v553
    %777 = vmatpush1.bf16.msra.mxu0 %v552
    %778 = vmatprep.subr.bf16.mxu0 %v555
    %779 = vmatpush1.bf16.msra.mxu0 %v554
    %780 = vmatprep.mubr.bf16.mxu0 %v175
    %781 = vmatmul.mubr.bf16.gmra.mrb[0].mxu0 %v174
    %v782 = vpop.f32.mrb[0].mxu0
    %v783 = vadd.f32 0.0, %v782
    %v784 = vpop.f32.mrb[0].mxu0
    %v785 = vadd.f32 0.0, %v784
    %v786 = vpop.f32.mrb[0].mxu0
    %v787 = vpop.f32.mrb[0].mxu0
    %788 = vdwg.mxu0
    %789 = vmatprep.subr.bf16.mxu0 %v557
    %790 = vmatpush1.bf16.msra.mxu0 %v556
    %791 = vmatprep.subr.bf16.mxu0 %v559
    %792 = vmatpush1.bf16.msra.mxu0 %v558
    %793 = vmatprep.subr.bf16.mxu0 %v561
    %794 = vmatpush1.bf16.msra.mxu0 %v560
    %795 = vmatprep.subr.bf16.mxu0 %v563
    %796 = vmatpush1.bf16.msra.mxu0 %v562
    %797 = vmatprep.subr.bf16.mxu0 %v565
    %798 = vmatpush1.bf16.msra.mxu0 %v564
    %799 = vmatprep.subr.bf16.mxu0 %v567
    %800 = vmatpush1.bf16.msra.mxu0 %v566
    %801 = vmatprep.subr.bf16.mxu0 %v569
    %802 = vmatpush1.bf16.msra.mxu0 %v568
    %803 = vmatprep.subr.bf16.mxu0 %v571
    %804 = vmatpush1.bf16.msra.mxu0 %v570
    %805 = vmatprep.subr.bf16.mxu0 %v573
    %806 = vmatpush1.bf16.msra.mxu0 %v572
    %807 = vmatprep.subr.bf16.mxu0 %v575
    %808 = vmatpush1.bf16.msra.mxu0 %v574
    %809 = vmatprep.subr.bf16.mxu0 %v577
    %810 = vmatpush1.bf16.msra.mxu0 %v576
    %811 = vmatprep.subr.bf16.mxu0 %v579
    %812 = vmatpush1.bf16.msra.mxu0 %v578
    %813 = vmatprep.subr.bf16.mxu0 %v581
    %814 = vmatpush1.bf16.msra.mxu0 %v580
    %815 = vmatprep.subr.bf16.mxu0 %v583
    %816 = vmatpush1.bf16.msra.mxu0 %v582
    %817 = vmatprep.subr.bf16.mxu0 %v585
    %818 = vmatpush1.bf16.msra.mxu0 %v584
    %819 = vmatprep.subr.bf16.mxu0 %v587
    %820 = vmatpush1.bf16.msra.mxu0 %v586
    %821 = vmatprep.mubr.bf16.mxu0 %v177
    %822 = vmatmul.mubr.bf16.gmra.mrb[0].mxu0 %v176
    %v823 = vpop.f32.mrb[0].mxu0
    %v824 = vadd.f32 %v783, %v823
    %v825 = vpop.f32.mrb[0].mxu0
    %v826 = vadd.f32 %v785, %v825
    %v827 = vpop.f32.mrb[0].mxu0
    %v828 = vpop.f32.mrb[0].mxu0
    %829 = vdwg.mxu0
    %830 = vmatprep.subr.bf16.mxu0 %v589
    %831 = vmatpush1.bf16.msra.mxu0 %v588
    %832 = vmatprep.subr.bf16.mxu0 %v591
    %833 = vmatpush1.bf16.msra.mxu0 %v590
    %834 = vmatprep.subr.bf16.mxu0 %v593
    %835 = vmatpush1.bf16.msra.mxu0 %v592
    %836 = vmatprep.subr.bf16.mxu0 %v595
    %837 = vmatpush1.bf16.msra.mxu0 %v594
    %838 = vmatprep.subr.bf16.mxu0 %v597
    %839 = vmatpush1.bf16.msra.mxu0 %v596
    %840 = vmatprep.subr.bf16.mxu0 %v599
    %841 = vmatpush1.bf16.msra.mxu0 %v598
    %842 = vmatprep.subr.bf16.mxu0 %v601
    %843 = vmatpush1.bf16.msra.mxu0 %v600
    %844 = vmatprep.subr.bf16.mxu0 %v603
    %845 = vmatpush1.bf16.msra.mxu0 %v602
    %846 = vmatprep.subr.bf16.mxu0 %v605
    %847 = vmatpush1.bf16.msra.mxu0 %v604
    %848 = vmatprep.subr.bf16.mxu0 %v607
    %849 = vmatpush1.bf16.msra.mxu0 %v606
    %850 = vmatprep.subr.bf16.mxu0 %v609
    %851 = vmatpush1.bf16.msra.mxu0 %v608
    %852 = vmatprep.subr.bf16.mxu0 %v611
    %853 = vmatpush1.bf16.msra.mxu0 %v610
    %854 = vmatprep.subr.bf16.mxu0 %v613
    %855 = vmatpush1.bf16.msra.mxu0 %v612
    %856 = vmatprep.subr.bf16.mxu0 %v615
    %857 = vmatpush1.bf16.msra.mxu0 %v614
    %858 = vmatprep.subr.bf16.mxu0 %v617
    %859 = vmatpush1.bf16.msra.mxu0 %v616
    %860 = vmatprep.subr.bf16.mxu0 %v619
    %861 = vmatpush1.bf16.msra.mxu0 %v618
    %862 = vmatprep.mubr.bf16.mxu0 %v179
    %863 = vmatmul.mubr.bf16.gmra.mrb[0].mxu0 %v178
    %v864 = vpop.f32.mrb[0].mxu0
    %v865 = vadd.f32 %v824, %v864
    %v866 = vpop.f32.mrb[0].mxu0
    %v867 = vadd.f32 %v826, %v866
    %v868 = vpop.f32.mrb[0].mxu0
    %v869 = vpop.f32.mrb[0].mxu0
    %870 = vdwg.mxu0
    %871 = vmatprep.subr.bf16.mxu0 %v621
    %872 = vmatpush1.bf16.msra.mxu0 %v620
    %873 = vmatprep.subr.bf16.mxu0 %v623
    %874 = vmatpush1.bf16.msra.mxu0 %v622
    %875 = vmatprep.subr.bf16.mxu0 %v625
    %876 = vmatpush1.bf16.msra.mxu0 %v624
    %877 = vmatprep.subr.bf16.mxu0 %v627
    %878 = vmatpush1.bf16.msra.mxu0 %v626
    %879 = vmatprep.subr.bf16.mxu0 %v629
    %880 = vmatpush1.bf16.msra.mxu0 %v628
    %881 = vmatprep.subr.bf16.mxu0 %v631
    %882 = vmatpush1.bf16.msra.mxu0 %v630
    %883 = vmatprep.subr.bf16.mxu0 %v633
    %884 = vmatpush1.bf16.msra.mxu0 %v632
    %885 = vmatprep.subr.bf16.mxu0 %v635
    %886 = vmatpush1.bf16.msra.mxu0 %v634
    %887 = vmatprep.subr.bf16.mxu0 0
    %888 = vmatpush1.bf16.msra.mxu0 0
    %889 = vmatprep.subr.bf16.mxu0 0
    %890 = vmatpush1.bf16.msra.mxu0 0
    %891 = vmatprep.subr.bf16.mxu0 0
    %892 = vmatpush1.bf16.msra.mxu0 0
    %893 = vmatprep.subr.bf16.mxu0 0
    %894 = vmatpush1.bf16.msra.mxu0 0
    %895 = vmatprep.subr.bf16.mxu0 0
    %896 = vmatpush1.bf16.msra.mxu0 0
    %897 = vmatprep.subr.bf16.mxu0 0
    %898 = vmatpush1.bf16.msra.mxu0 0
    %899 = vmatprep.subr.bf16.mxu0 0
    %900 = vmatpush1.bf16.msra.mxu0 0
    %901 = vmatprep.subr.bf16.mxu0 0
    %902 = vmatpush1.bf16.msra.mxu0 0
    %903 = vmatprep.mubr.bf16.mxu0 0
    %904 = vmatmul.mubr.bf16.gmra.mrb[0].mxu0 %v180
    %v905 = vpop.f32.mrb[0].mxu0
    %v906 = vadd.f32 %v865, %v905
    %v907 = vpop.f32.mrb[0].mxu0
    %v908 = vadd.f32 %v867, %v907
    %v909 = vpop.f32.mrb[0].mxu0
    %v910 = vpop.f32.mrb[0].mxu0
    %911 = vdwg.mxu0
    %v912 = vld [vmem:[#allocation5] sm:$0xff]
    %v913 = vld [vmem:[#allocation5 + $0x8] sm:$0xff]
    %v914 = vld [vmem:[#allocation5 + $0x10] sm:$0xff]
    %v915 = vld [vmem:[#allocation5 + $0x18] sm:$0xff]
    %v916 = vld [vmem:[#allocation5 + $0x20] sm:$0xff]
    %v917 = vld [vmem:[#allocation5 + $0x28] sm:$0xff]
    %v918 = vld [vmem:[#allocation5 + $0x30] sm:$0xff]
    %v919 = vld [vmem:[#allocation5 + $0x38] sm:$0xff]
    %v920 = vld [vmem:[#allocation5 + $0x40] sm:$0xff]
    %v921 = vld [vmem:[#allocation5 + $0x48] sm:$0xff]
    %v922 = vld [vmem:[#allocation5 + $0x50] sm:$0xff]
    %v923 = vld [vmem:[#allocation5 + $0x58] sm:$0xff]
    %v924 = vld [vmem:[#allocation5 + $0x60] sm:$0xff]
    %v925 = vld [vmem:[#allocation5 + $0x68] sm:$0xff]
    %v926 = vld [vmem:[#allocation5 + $0x70] sm:$0xff]
    %v927 = vld [vmem:[#allocation5 + $0x78] sm:$0xff]
    %v928 = vld [vmem:[#allocation5 + $0x80] sm:$0xff]
    %v929 = vld [vmem:[#allocation5 + $0x88] sm:$0xff]
    %v930 = vld [vmem:[#allocation5 + $0x90] sm:$0xff]
    %v931 = vld [vmem:[#allocation5 + $0x98] sm:$0xff]
    %v932 = vld [vmem:[#allocation5 + $0xa0] sm:$0xff]
    %v933 = vld [vmem:[#allocation5 + $0xa8] sm:$0xff]
    %v934 = vld [vmem:[#allocation5 + $0xb0] sm:$0xff]
    %v935 = vld [vmem:[#allocation5 + $0xb8] sm:$0xff]
    %v936 = vld [vmem:[#allocation5 + $0xc0] sm:$0xff]
    %v937 = vld [vmem:[#allocation5 + $0xc8] sm:$0xff]
    %v938 = vld [vmem:[#allocation5 + $0xd0] sm:$0xff]
    %v939 = vld [vmem:[#allocation5 + $0xd8] sm:$0xff]
    %v940 = vld [vmem:[#allocation5 + $0xe0] sm:$0xff]
    %v941 = vld [vmem:[#allocation5 + $0xe8] sm:$0xff]
    %v942 = vld [vmem:[#allocation5 + $0xf0] sm:$0xff]
    %v943 = vld [vmem:[#allocation5 + $0xf8] sm:$0xff]
    %v944 = vpack.c.bf16 %v906, %v906
    %v945 = vpack.c.bf16 %v908, %v908
    %v978 = vunpack.c.l.b16 %v912
    %v979 = vunpack.c.h.b16 %v912
    %v980 = vunpack.c.l.b16 %v913
    %v981 = vunpack.c.h.b16 %v913
    %v982 = vunpack.c.l.b16 %v914
    %v983 = vunpack.c.h.b16 %v914
    %v984 = vunpack.c.l.b16 %v915
    %v985 = vunpack.c.h.b16 %v915
    %v986 = vunpack.c.l.b16 %v916
    %v987 = vunpack.c.h.b16 %v916
    %v988 = vunpack.c.l.b16 %v917
    %v989 = vunpack.c.h.b16 %v917
    %v990 = vunpack.c.l.b16 %v918
    %v991 = vunpack.c.h.b16 %v918
    %v992 = vunpack.c.l.b16 %v919
    %v993 = vunpack.c.h.b16 %v919
    %v994 = vunpack.c.l.b16 %v920
    %v995 = vunpack.c.h.b16 %v920
    %v996 = vunpack.c.l.b16 %v921
    %v997 = vunpack.c.h.b16 %v921
    %v998 = vunpack.c.l.b16 %v922
    %v999 = vunpack.c.h.b16 %v922
    %v1000 = vunpack.c.l.b16 %v923
    %v1001 = vunpack.c.h.b16 %v923
    %v1002 = vunpack.c.l.b16 %v924
    %v1003 = vunpack.c.h.b16 %v924
    %v1004 = vunpack.c.l.b16 %v925
    %v1005 = vunpack.c.h.b16 %v925
    %v1006 = vunpack.c.l.b16 %v926
    %v1007 = vunpack.c.h.b16 %v926
    %v1008 = vunpack.c.l.b16 %v927
    %v1009 = vunpack.c.h.b16 %v927
    %v1010 = vunpack.c.l.b16 %v928
    %v1011 = vunpack.c.h.b16 %v928
    %v1012 = vunpack.c.l.b16 %v929
    %v1013 = vunpack.c.h.b16 %v929
    %v1014 = vunpack.c.l.b16 %v930
    %v1015 = vunpack.c.h.b16 %v930
    %v1016 = vunpack.c.l.b16 %v931
    %v1017 = vunpack.c.h.b16 %v931
    %v1018 = vunpack.c.l.b16 %v932
    %v1019 = vunpack.c.h.b16 %v932
    %v1020 = vunpack.c.l.b16 %v933
    %v1021 = vunpack.c.h.b16 %v933
    %v1022 = vunpack.c.l.b16 %v934
    %v1023 = vunpack.c.h.b16 %v934
    %v1024 = vunpack.c.l.b16 %v935
    %v1025 = vunpack.c.h.b16 %v935
    %v1026 = vunpack.c.l.b16 %v936
    %v1027 = vunpack.c.h.b16 %v936
    %v1028 = vunpack.c.l.b16 %v937
    %v1029 = vunpack.c.h.b16 %v937
    %v1030 = vunpack.c.l.b16 %v938
    %v1031 = vunpack.c.h.b16 %v938
    %v1032 = vunpack.c.l.b16 %v939
    %v1033 = vunpack.c.h.b16 %v939
    %v1034 = vunpack.c.l.b16 %v940
    %v1035 = vunpack.c.h.b16 %v940
    %v1036 = vunpack.c.l.b16 %v941
    %v1037 = vunpack.c.h.b16 %v941
    %v1038 = vunpack.c.l.b16 %v942
    %v1039 = vunpack.c.h.b16 %v942
    %v1040 = vunpack.c.l.b16 %v943
    %v1041 = vunpack.c.h.b16 %v943
    %v1042 = vpack.c.b16 %v980, %v978
    %v1043 = vpack.c.b16 %v981, %v979
    %v1044 = vpack.c.b16 %v984, %v982
    %v1045 = vpack.c.b16 %v985, %v983
    %v1046 = vpack.c.b16 %v988, %v986
    %v1047 = vpack.c.b16 %v989, %v987
    %v1048 = vpack.c.b16 %v992, %v990
    %v1049 = vpack.c.b16 %v993, %v991
    %v1050 = vpack.c.b16 %v996, %v994
    %v1051 = vpack.c.b16 %v997, %v995
    %v1052 = vpack.c.b16 %v1000, %v998
    %v1053 = vpack.c.b16 %v1001, %v999
    %v1054 = vpack.c.b16 %v1004, %v1002
    %v1055 = vpack.c.b16 %v1005, %v1003
    %v1056 = vpack.c.b16 %v1008, %v1006
    %v1057 = vpack.c.b16 %v1009, %v1007
    %v1058 = vpack.c.b16 %v1012, %v1010
    %v1059 = vpack.c.b16 %v1013, %v1011
    %v1060 = vpack.c.b16 %v1016, %v1014
    %v1061 = vpack.c.b16 %v1017, %v1015
    %v1062 = vpack.c.b16 %v1020, %v1018
    %v1063 = vpack.c.b16 %v1021, %v1019
    %v1064 = vpack.c.b16 %v1024, %v1022
    %v1065 = vpack.c.b16 %v1025, %v1023
    %v1066 = vpack.c.b16 %v1028, %v1026
    %v1067 = vpack.c.b16 %v1029, %v1027
    %v1068 = vpack.c.b16 %v1032, %v1030
    %v1069 = vpack.c.b16 %v1033, %v1031
    %v1070 = vpack.c.b16 %v1036, %v1034
    %v1071 = vpack.c.b16 %v1037, %v1035
    %v1072 = vpack.c.b16 %v1040, %v1038
    %v1073 = vpack.c.b16 %v1041, %v1039
    %1106 = vmatprep.subr.bf16.mxu0 %v1043
    %1107 = vmatpush1.bf16.msra.mxu0 %v1042
    %1108 = vmatprep.subr.bf16.mxu0 %v1045
    %1109 = vmatpush1.bf16.msra.mxu0 %v1044
    %1110 = vmatprep.subr.bf16.mxu0 %v1047
    %1111 = vmatpush1.bf16.msra.mxu0 %v1046
    %1112 = vmatprep.subr.bf16.mxu0 %v1049
    %1113 = vmatpush1.bf16.msra.mxu0 %v1048
    %1114 = vmatprep.subr.bf16.mxu0 %v1051
    %1115 = vmatpush1.bf16.msra.mxu0 %v1050
    %1116 = vmatprep.subr.bf16.mxu0 %v1053
    %1117 = vmatpush1.bf16.msra.mxu0 %v1052
    %1118 = vmatprep.subr.bf16.mxu0 %v1055
    %1119 = vmatpush1.bf16.msra.mxu0 %v1054
    %1120 = vmatprep.subr.bf16.mxu0 %v1057
    %1121 = vmatpush1.bf16.msra.mxu0 %v1056
    %1122 = vmatprep.subr.bf16.mxu0 %v1059
    %1123 = vmatpush1.bf16.msra.mxu0 %v1058
    %1124 = vmatprep.subr.bf16.mxu0 %v1061
    %1125 = vmatpush1.bf16.msra.mxu0 %v1060
    %1126 = vmatprep.subr.bf16.mxu0 %v1063
    %1127 = vmatpush1.bf16.msra.mxu0 %v1062
    %1128 = vmatprep.subr.bf16.mxu0 %v1065
    %1129 = vmatpush1.bf16.msra.mxu0 %v1064
    %1130 = vmatprep.subr.bf16.mxu0 %v1067
    %1131 = vmatpush1.bf16.msra.mxu0 %v1066
    %1132 = vmatprep.subr.bf16.mxu0 %v1069
    %1133 = vmatpush1.bf16.msra.mxu0 %v1068
    %1134 = vmatprep.subr.bf16.mxu0 %v1071
    %1135 = vmatpush1.bf16.msra.mxu0 %v1070
    %1136 = vmatprep.subr.bf16.mxu0 %v1073
    %1137 = vmatpush1.bf16.msra.mxu0 %v1072
    %1138 = vmatprep.mubr.bf16.mxu0 %v945
    %1139 = vmatmul.mubr.bf16.gmra.mrb[0].mxu0 %v944
    %v1140 = vpop.f32.mrb[0].mxu0
    %v1141 = vadd.f32 0.0, %v1140
    %v1142 = vpop.f32.mrb[0].mxu0
    %v1143 = vadd.f32 0.0, %v1142
    %v1144 = vpop.f32.mrb[0].mxu0
    %v1145 = vpop.f32.mrb[0].mxu0
    %1146 = vdwg.mxu0
    %v1147 = vmul.f32 %v1141, %v906
    %v1148 = vmul.f32 %v1143, %v908
    %v1149 = vpack.c.bf16 %v1147, %v1147
    %v1150 = vpack.c.bf16 %v1148, %v1148
    %1151 = vmatprep.subr.bf16.mxu0 %v1043
    %1152 = vmatpush1.bf16.msra.mxu0 %v1042
    %1153 = vmatprep.subr.bf16.mxu0 %v1045
    %1154 = vmatpush1.bf16.msra.mxu0 %v1044
    %1155 = vmatprep.subr.bf16.mxu0 %v1047
    %1156 = vmatpush1.bf16.msra.mxu0 %v1046
    %1157 = vmatprep.subr.bf16.mxu0 %v1049
    %1158 = vmatpush1.bf16.msra.mxu0 %v1048
    %1159 = vmatprep.subr.bf16.mxu0 %v1051
    %1160 = vmatpush1.bf16.msra.mxu0 %v1050
    %1161 = vmatprep.subr.bf16.mxu0 %v1053
    %1162 = vmatpush1.bf16.msra.mxu0 %v1052
    %1163 = vmatprep.subr.bf16.mxu0 %v1055
    %1164 = vmatpush1.bf16.msra.mxu0 %v1054
    %1165 = vmatprep.subr.bf16.mxu0 %v1057
    %1166 = vmatpush1.bf16.msra.mxu0 %v1056
    %1167 = vmatprep.subr.bf16.mxu0 %v1059
    %1168 = vmatpush1.bf16.msra.mxu0 %v1058
    %1169 = vmatprep.subr.bf16.mxu0 %v1061
    %1170 = vmatpush1.bf16.msra.mxu0 %v1060
    %1171 = vmatprep.subr.bf16.mxu0 %v1063
    %1172 = vmatpush1.bf16.msra.mxu0 %v1062
    %1173 = vmatprep.subr.bf16.mxu0 %v1065
    %1174 = vmatpush1.bf16.msra.mxu0 %v1064
    %1175 = vmatprep.subr.bf16.mxu0 %v1067
    %1176 = vmatpush1.bf16.msra.mxu0 %v1066
    %1177 = vmatprep.subr.bf16.mxu0 %v1069
    %1178 = vmatpush1.bf16.msra.mxu0 %v1068
    %1179 = vmatprep.subr.bf16.mxu0 %v1071
    %1180 = vmatpush1.bf16.msra.mxu0 %v1070
    %1181 = vmatprep.subr.bf16.mxu0 %v1073
    %1182 = vmatpush1.bf16.msra.mxu0 %v1072
    %1183 = vmatprep.mubr.bf16.mxu0 %v1150
    %1184 = vmatmul.mubr.bf16.gmra.mrb[0].mxu0 %v1149
    %v1185 = vpop.f32.mrb[0].mxu0
    %v1186 = vadd.f32 0.0, %v1185
    %v1187 = vpop.f32.mrb[0].mxu0
    %v1188 = vadd.f32 0.0, %v1187
    %v1189 = vpop.f32.mrb[0].mxu0
    %v1190 = vpop.f32.mrb[0].mxu0
    %1191 = vdwg.mxu0
    %v1192 = vmul.f32 %v1186, %v906
    %v1193 = vmul.f32 %v1188, %v908
    %v1194 = vpack.c.bf16 %v1192, %v1192
    %v1195 = vpack.c.bf16 %v1193, %v1193
    %v1196 = vld [vmem:[%s3] sm:$0xf]
    %v1197 = vld [vmem:[%s3 + $0x4] sm:$0xf]
    %v1198 = vld [vmem:[%s3 + $0x8] sm:$0xf]
    %v1199 = vld [vmem:[%s3 + $0xc] sm:$0xf]
    %v1200 = vld [vmem:[%s3 + $0x10] sm:$0xf]
    %v1201 = vld [vmem:[%s3 + $0x14] sm:$0xf]
    %v1202 = vld [vmem:[%s3 + $0x18] sm:$0xf]
    %v1203 = vld [vmem:[%s3 + $0x1c] sm:$0xf]
    %v1204 = vld [vmem:[%s3 + $0x20] sm:$0xf]
    %v1205 = vld [vmem:[%s3 + $0x24] sm:$0xf]
    %v1206 = vld [vmem:[%s3 + $0x28] sm:$0xf]
    %v1207 = vld [vmem:[%s3 + $0x2c] sm:$0xf]
    %v1208 = vld [vmem:[%s3 + $0x30] sm:$0xf]
    %v1209 = vld [vmem:[%s3 + $0x34] sm:$0xf]
    %v1210 = vld [vmem:[%s3 + $0x38] sm:$0xf]
    %v1211 = vld [vmem:[%s3 + $0x3c] sm:$0xf]
    %v1212 = vld [vmem:[%s3 + $0x40] sm:$0xf]
    %v1213 = vld [vmem:[%s3 + $0x44] sm:$0xf]
    %v1214 = vld [vmem:[%s3 + $0x48] sm:$0xf]
    %v1215 = vld [vmem:[%s3 + $0x4c] sm:$0xf]
    %v1216 = vld [vmem:[%s3 + $0x50] sm:$0xf]
    %v1217 = vld [vmem:[%s3 + $0x54] sm:$0xf]
    %v1218 = vld [vmem:[%s3 + $0x58] sm:$0xf]
    %v1219 = vld [vmem:[%s3 + $0x5c] sm:$0xf]
    %v1220 = vld [vmem:[%s3 + $0x60] sm:$0xf]
    %v1221 = vld [vmem:[%s3 + $0x64] sm:$0xf]
    %v1222 = vld [vmem:[%s3 + $0x68] sm:$0xf]
    %v1223 = vld [vmem:[%s3 + $0x6c] sm:$0xf]
    %v1224 = vld [vmem:[%s3 + $0x70] sm:$0xf]
    %v1225 = vld [vmem:[%s3 + $0x74] sm:$0xf]
    %v1226 = vld [vmem:[%s3 + $0x78] sm:$0xf]
    %v1227 = vld [vmem:[%s3 + $0x7c] sm:$0xf]
    %v1260 = vunpack.c.l.b16 %v1196
    %v1261 = vunpack.c.l.b16 %v1197
    %v1262 = vunpack.c.l.b16 %v1198
    %v1263 = vunpack.c.l.b16 %v1199
    %v1264 = vunpack.c.l.b16 %v1200
    %v1265 = vunpack.c.l.b16 %v1201
    %v1266 = vunpack.c.l.b16 %v1202
    %v1267 = vunpack.c.l.b16 %v1203
    %v1268 = vunpack.c.l.b16 %v1204
    %v1269 = vunpack.c.l.b16 %v1205
    %v1270 = vunpack.c.l.b16 %v1206
    %v1271 = vunpack.c.l.b16 %v1207
    %v1272 = vunpack.c.l.b16 %v1208
    %v1273 = vunpack.c.l.b16 %v1209
    %v1274 = vunpack.c.l.b16 %v1210
    %v1275 = vunpack.c.l.b16 %v1211
    %v1276 = vunpack.c.l.b16 %v1212
    %v1277 = vunpack.c.l.b16 %v1213
    %v1278 = vunpack.c.l.b16 %v1214
    %v1279 = vunpack.c.l.b16 %v1215
    %v1280 = vunpack.c.l.b16 %v1216
    %v1281 = vunpack.c.l.b16 %v1217
    %v1282 = vunpack.c.l.b16 %v1218
    %v1283 = vunpack.c.l.b16 %v1219
    %v1284 = vunpack.c.l.b16 %v1220
    %v1285 = vunpack.c.l.b16 %v1221
    %v1286 = vunpack.c.l.b16 %v1222
    %v1287 = vunpack.c.l.b16 %v1223
    %v1288 = vunpack.c.l.b16 %v1224
    %v1289 = vunpack.c.l.b16 %v1225
    %v1290 = vunpack.c.l.b16 %v1226
    %v1291 = vunpack.c.l.b16 %v1227
    %v1292 = vpack.c.b16 %v1261, %v1260
    %v1293 = vpack.c.b16 %v1263, %v1262
    %v1294 = vpack.c.b16 %v1265, %v1264
    %v1295 = vpack.c.b16 %v1267, %v1266
    %v1296 = vpack.c.b16 %v1269, %v1268
    %v1297 = vpack.c.b16 %v1271, %v1270
    %v1298 = vpack.c.b16 %v1273, %v1272
    %v1299 = vpack.c.b16 %v1275, %v1274
    %v1300 = vpack.c.b16 %v1277, %v1276
    %v1301 = vpack.c.b16 %v1279, %v1278
    %v1302 = vpack.c.b16 %v1281, %v1280
    %v1303 = vpack.c.b16 %v1283, %v1282
    %v1304 = vpack.c.b16 %v1285, %v1284
    %v1305 = vpack.c.b16 %v1287, %v1286
    %v1306 = vpack.c.b16 %v1289, %v1288
    %v1307 = vpack.c.b16 %v1291, %v1290
    %1324 = vmatprep.subr.bf16.mxu0 0
    %1325 = vmatpush1.bf16.msra.mxu0 %v1292
    %1326 = vmatprep.subr.bf16.mxu0 0
    %1327 = vmatpush1.bf16.msra.mxu0 %v1293
    %1328 = vmatprep.subr.bf16.mxu0 0
    %1329 = vmatpush1.bf16.msra.mxu0 %v1294
    %1330 = vmatprep.subr.bf16.mxu0 0
    %1331 = vmatpush1.bf16.msra.mxu0 %v1295
    %1332 = vmatprep.subr.bf16.mxu0 0
    %1333 = vmatpush1.bf16.msra.mxu0 %v1296
    %1334 = vmatprep.subr.bf16.mxu0 0
    %1335 = vmatpush1.bf16.msra.mxu0 %v1297
    %1336 = vmatprep.subr.bf16.mxu0 0
    %1337 = vmatpush1.bf16.msra.mxu0 %v1298
    %1338 = vmatprep.subr.bf16.mxu0 0
    %1339 = vmatpush1.bf16.msra.mxu0 %v1299
    %1340 = vmatprep.subr.bf16.mxu0 0
    %1341 = vmatpush1.bf16.msra.mxu0 %v1300
    %1342 = vmatprep.subr.bf16.mxu0 0
    %1343 = vmatpush1.bf16.msra.mxu0 %v1301
    %1344 = vmatprep.subr.bf16.mxu0 0
    %1345 = vmatpush1.bf16.msra.mxu0 %v1302
    %1346 = vmatprep.subr.bf16.mxu0 0
    %1347 = vmatpush1.bf16.msra.mxu0 %v1303
    %1348 = vmatprep.subr.bf16.mxu0 0
    %1349 = vmatpush1.bf16.msra.mxu0 %v1304
    %1350 = vmatprep.subr.bf16.mxu0 0
    %1351 = vmatpush1.bf16.msra.mxu0 %v1305
    %1352 = vmatprep.subr.bf16.mxu0 0
    %1353 = vmatpush1.bf16.msra.mxu0 %v1306
    %1354 = vmatprep.subr.bf16.mxu0 0
    %1355 = vmatpush1.bf16.msra.mxu0 %v1307
    %1356 = vmatprep.mubr.bf16.mxu0 %v1195
    %1357 = vmatmul.mubr.bf16.gmra.mrb[0].mxu0 %v1194
    %v1358 = vpop.f32.mrb[0].mxu0
    %v1359 = vadd.f32 0.0, %v1358
    %v1360 = vpop.f32.mrb[0].mxu0
    %v1361 = vpop.f32.mrb[0].mxu0
    %v1362 = vpop.f32.mrb[0].mxu0
    %1363 = vdwg.mxu0
    %1364 = vst [vmem:[#allocation7] sm:$0xff] %v1359
    // Predicated region
    $region26: #{ddnet_forward.1} parent=1 // pred_check
      _
    $region27: #{ddnet_forward.1} parent=1 // pred_check_branch
      %1366 = sbr.rel (0) target = $region29
    $region28: #{ddnet_forward.1} parent=1 // pred_region
      %s1368 = ssub.s32 128, 128
      %1369 = vsyncadd [#allocation4], %s1368
      %s1371 = sshll.u32 [#allocation7], 4
      %s1372 = int_to_ptr.vmem [resolvable:$true] %s1371
      %1374 = dma.vmem_to_hbm [thread:$0]  %s1372, 128, %s4, [#allocation4]
    $region29: #{ddnet_forward.1} parent=1 // pred_fallthru
      _
    // Predicated region
    $region30: #{ddnet_forward.1} parent=1 // pred_check
      _
    $region31: #{ddnet_forward.1} parent=1 // pred_check_branch
      %1376 = sbr.rel (0) target = $region33
    $region32: #{ddnet_forward.1} parent=1 // pred_region
      %1377 = dma.done [#allocation4], 128
    $region33: #{ddnet_forward.1} parent=1 // pred_fallthru
      _
    %1378 = vsyncpa [#allocation3], 1
    %1379 = vsyncpa [#allocation6], 1
    %1380 = vsyncpa [#allocation4], 1

</llo_original>
